<compile_context>
chip_gen: v5e
topology: v5e:2x2
jax: 0.10.0
libtpu: 0.0.40
codegen_flags: <defaults>
</compile_context>

<pallas_src>
import jax
import jax.numpy as jnp
from jax.experimental import pallas as pl
from jax.experimental.pallas import tpu as pltpu


# ---------------------------------------------------------------------------
# Spectral norm (parameter setup glue, plain JAX — matches torch SpectralNorm)
# ---------------------------------------------------------------------------
def l2normalize(v, eps=1e-4):
    return v / (jnp.linalg.norm(v) + eps)


def spectral_norm_weight(w_bar, u, power_iterations=1):
    # w_bar: (out_features, in_features), u: (out_features,)
    v = None
    for _ in range(power_iterations):
        v = l2normalize(jnp.matmul(w_bar.T, u))
        u = l2normalize(jnp.matmul(w_bar, v))
    sigma = jnp.dot(u, jnp.matmul(w_bar, v))
    return w_bar / sigma


# ---------------------------------------------------------------------------
# Tiling helpers
# ---------------------------------------------------------------------------
def _round_up(n, m):
    return -(-n // m) * m


def _sublane_multiple(dtype):
    """Sublane packing factor: 8 rows (f32), 16 (bf16/f16), 32 (int8/fp8)."""
    itemsize = jnp.dtype(dtype).itemsize
    return max(8, 32 // max(1, itemsize))


def _pick_lane_tile(hw_p):
    """Largest power-of-two multiple of 128 that divides hw_p (hw_p % 128 == 0)."""
    for cand in (16384, 8192, 4096, 2048, 1024, 512, 256, 128):
        if cand <= hw_p and hw_p % cand == 0:
            return cand
    return hw_p


def _pick_row_tile(rows_p, hw_t, itemsize, sub_mult, target_bytes=10 << 20):
    """Row tile: multiple of sub_mult dividing rows_p, block ~target_bytes."""
    per_row = max(1, hw_t * itemsize)
    max_rows = max(sub_mult, (target_bytes // per_row) // sub_mult * sub_mult)
    start = min(rows_p, max_rows)
    start -= start % sub_mult
    start = max(start, sub_mult)
    for cand in range(start, sub_mult - 1, -sub_mult):
        if rows_p % cand == 0:
            return cand
    return rows_p  # unreachable: rows_p is a multiple of sub_mult


# ---------------------------------------------------------------------------
# Pallas kernel: fused per-(b,c) affine  out = a * x + b   (streaming FMA)
# ---------------------------------------------------------------------------
def cond_actnorm_kernel(a_ref, b_ref, x_ref, o_ref):
    # a_ref, b_ref: (Rt, 1)  fused per-row coefficients (f32)
    # x_ref, o_ref: (Rt, HWt) streaming slab
    o_ref[...] = (a_ref[...] * x_ref[...] + b_ref[...]).astype(o_ref.dtype)


def conditional_actnorm2d(x, y, w_gamma_bar, u_gamma, w_beta_bar, u_beta,
                          actnorm_scale, actnorm_loc, *, donate_x=False):
    """x: (B, C, H, W) NCHW; y: (B, K).  Returns (B, C, H, W)."""
    B, C, H, W = x.shape
    HW = H * W
    rows = B * C
    itemsize = jnp.dtype(x.dtype).itemsize
    sub_mult = _sublane_multiple(x.dtype)

    # --- parameter glue (tiny, plain JAX, f32) -----------------------------
    wg_eff = spectral_norm_weight(w_gamma_bar, u_gamma)          # (C, K)
    wb_eff = spectral_norm_weight(w_beta_bar, u_beta)            # (C, K)
    yf = y.astype(jnp.float32)
    gamma = yf @ wg_eff.T.astype(jnp.float32) + 1.0              # (B, C)
    beta = yf @ wb_eff.T.astype(jnp.float32)                     # (B, C)

    scale = actnorm_scale.reshape(1, C).astype(jnp.float32)      # (1, C)
    loc = actnorm_loc.reshape(1, C).astype(jnp.float32)          # (1, C)

    # Fold ActNorm into the conditional affine:
    #   gamma*(scale*(x+loc)) + beta = (gamma*scale)*x + (gamma*scale*loc + beta)
    a_coef = gamma * scale                                       # (B, C)
    b_coef = a_coef * loc + beta                                 # (B, C)

    # --- pad to lane/sublane-aligned extents (no masked vst, no huge blocks) --
    rows_p = _round_up(rows, sub_mult)
    hw_p = _round_up(HW, 128)

    x_flat = x.reshape(rows, HW)
    a_col = a_coef.reshape(rows, 1)
    b_col = b_coef.reshape(rows, 1)
    padded = (rows_p != rows) or (hw_p != HW)
    if padded:
        x_flat = jnp.pad(x_flat, ((0, rows_p - rows), (0, hw_p - HW)))
        a_col = jnp.pad(a_col, ((0, rows_p - rows), (0, 0)))
        b_col = jnp.pad(b_col, ((0, rows_p - rows), (0, 0)))

    # --- tiling ------------------------------------------------------------
    hw_t = _pick_lane_tile(hw_p)
    row_t = _pick_row_tile(rows_p, hw_t, itemsize, sub_mult)

    # Guarantee >= 2 grid blocks (v7x: 2 TensorCores share parallel grid axes).
    # Prefer splitting the lane axis: keeps both shards lane-dense and keeps
    # the sublane packing alignment; only fall back to halving rows.
    if (rows_p // row_t) * (hw_p // hw_t) < 2:
        if hw_t >= 256:
            hw_t //= 2
        elif row_t % (2 * sub_mult) == 0:
            row_t //= 2

    # Grid order (rows, HW): HW is the fastest axis, so the a/b block index
    # (i, 0) is unchanged across consecutive steps and Pallas skips
    # re-DMAing the coefficient columns.  Do NOT swap these axes.
    grid = (rows_p // row_t, hw_p // hw_t)

    # --- VMEM budget derived from the actual block math --------------------
    block_bytes = row_t * hw_t * itemsize
    # x + out, double-buffered, plus tiny double-buffered a/b columns + slack.
    vmem_needed = 4 * block_bytes + 4 * row_t * 4 + (2 << 20)
    vmem_limit = int(min(max(vmem_needed, 16 << 20), 56 << 20))

    cost = pl.CostEstimate(
        flops=2 * rows_p * hw_p,
        transcendentals=0,
        bytes_accessed=2 * rows_p * hw_p * itemsize + 2 * rows_p * 4,
    )

    out_flat = pl.pallas_call(
        cond_actnorm_kernel,
        out_shape=jax.ShapeDtypeStruct((rows_p, hw_p), x.dtype),
        grid=grid,
        in_specs=[
            pl.BlockSpec((row_t, 1), lambda i, j: (i, 0)),     # a
            pl.BlockSpec((row_t, 1), lambda i, j: (i, 0)),     # b
            pl.BlockSpec((row_t, hw_t), lambda i, j: (i, j)),  # x slab
        ],
        out_specs=pl.BlockSpec((row_t, hw_t), lambda i, j: (i, j)),
        compiler_params=pltpu.CompilerParams(
            dimension_semantics=("parallel", "parallel"),
            vmem_limit_bytes=vmem_limit,
        ),
        cost_estimate=cost,
        input_output_aliases=({2: 0} if donate_x else {}),
    )(a_col, b_col, x_flat)

    if padded:
        out_flat = out_flat[:rows, :HW]
    return out_flat.reshape(B, C, H, W)


# ---------------------------------------------------------------------------
# Pure-JAX reference (for a quick correctness check)
# ---------------------------------------------------------------------------
def reference(x, y, w_gamma_bar, u_gamma, w_beta_bar, u_beta, scale, loc):
    B, C, H, W = x.shape
    wg = spectral_norm_weight(w_gamma_bar, u_gamma)
    wb = spectral_norm_weight(w_beta_bar, u_beta)
    out = scale.reshape(1, C, 1, 1) * (x + loc.reshape(1, C, 1, 1))
    gamma = y @ wg.T + 1.0
    beta = y @ wb.T
    return gamma.reshape(B, C, 1, 1) * out + beta.reshape(B, C, 1, 1)


def _make_params(key, B, C, H, W, K):
    k = jax.random.split(key, 8)
    x = jax.random.normal(k[0], (B, C, H, W), dtype=jnp.float32)
    y = jax.random.normal(k[1], (B, K), dtype=jnp.float32)
    # nn.Linear(num_classes, num_features, bias=False) -> weight (C, K)
    w_gamma_bar = jax.random.normal(k[2], (C, K), dtype=jnp.float32) * 0.1
    w_beta_bar = jax.random.normal(k[3], (C, K), dtype=jnp.float32) * 0.1
    u_gamma = l2normalize(jax.random.normal(k[4], (C,), dtype=jnp.float32))
    u_beta = l2normalize(jax.random.normal(k[5], (C,), dtype=jnp.float32))
    # ActNorm params (1, C, 1, 1) in torch; stored flat (C,) here
    actnorm_scale = 1.0 + 0.1 * jax.random.normal(k[6], (C,), dtype=jnp.float32)
    actnorm_loc = 0.1 * jax.random.normal(k[7], (C,), dtype=jnp.float32)
    return x, y, w_gamma_bar, u_gamma, w_beta_bar, u_beta, actnorm_scale, actnorm_loc


if __name__ == "__main__":
    key = jax.random.PRNGKey(0)
    key_a, key_b = jax.random.split(key)

    # --- aligned case: B=2, C=8 (num_features), 16x16, K=10 (num_classes) --
    args = _make_params(key_a, 2, 8, 16, 16, 10)
    out = conditional_actnorm2d(*args)
    out = jax.block_until_ready(out)
    ref = reference(*args)
    assert out.shape == (2, 8, 16, 16)
    assert jnp.allclose(out, ref, atol=1e-5, rtol=1e-5), "mismatch vs reference (aligned)"

    # --- ragged case: HW and rows not multiples of (128, 8) -> padding path --
    args_r = _make_params(key_b, 2, 6, 15, 9, 10)
    out_r = conditional_actnorm2d(*args_r)
    out_r = jax.block_until_ready(out_r)
    ref_r = reference(*args_r)
    assert out_r.shape == (2, 6, 15, 9)
    assert jnp.allclose(out_r, ref_r, atol=1e-5, rtol=1e-5), "mismatch vs reference (ragged)"

    print("KERNEL_OK")
</pallas_src>

<mosaic_0001>
module attributes {stable_mosaic.version = 11 : i64} {
  func.func @cond_actnorm_kernel(%arg0: i32, %arg1: i32, %arg2: memref<16x1xf32, #tpu.memory_space<vmem>>, %arg3: memref<16x1xf32, #tpu.memory_space<vmem>>, %arg4: memref<16x128xf32, #tpu.memory_space<vmem>>, %arg5: memref<16x128xf32, #tpu.memory_space<vmem>>) attributes {dimension_semantics = [#tpu.dimension_semantics<parallel>, #tpu.dimension_semantics<parallel>], iteration_bounds = array<i64: 1, 2>, scalar_prefetch = 0 : i64, scratch_operands = 0 : i64, tpu.core_type = #tpu.core_type<tc>, window_params = [{transform_indices = @transform_0, window_bounds = array<i64: 16, 1>}, {transform_indices = @transform_1, window_bounds = array<i64: 16, 1>}, {transform_indices = @transform_2, window_bounds = array<i64: 16, 128>}, {transform_indices = @transform_3, window_bounds = array<i64: 16, 128>}]} {
    %c0 = arith.constant 0 : index
    %c0_0 = arith.constant 0 : index
    %0 = vector.load %arg2[%c0, %c0_0] : memref<16x1xf32, #tpu.memory_space<vmem>>, vector<16x1xf32>
    %c0_1 = arith.constant 0 : index
    %c0_2 = arith.constant 0 : index
    %1 = vector.load %arg4[%c0_1, %c0_2] : memref<16x128xf32, #tpu.memory_space<vmem>>, vector<16x128xf32>
    %2 = vector.broadcast %0 : vector<16x1xf32> to vector<16x128xf32>
    %3 = arith.mulf %2, %1 : vector<16x128xf32>
    %c0_3 = arith.constant 0 : index
    %c0_4 = arith.constant 0 : index
    %4 = vector.load %arg3[%c0_3, %c0_4] : memref<16x1xf32, #tpu.memory_space<vmem>>, vector<16x1xf32>
    %5 = vector.broadcast %4 : vector<16x1xf32> to vector<16x128xf32>
    %6 = arith.addf %3, %5 : vector<16x128xf32>
    %c0_5 = arith.constant 0 : index
    %c0_6 = arith.constant 0 : index
    %7 = vector.load %arg5[%c0_5, %c0_6] : memref<16x128xf32, #tpu.memory_space<vmem>>, vector<16x128xf32>
    tpu.vector_store %arg5[%c0_5, %c0_6], %6 {strides = array<i32>} : memref<16x128xf32, #tpu.memory_space<vmem>>, vector<16x128xf32>,
    return
  }
  func.func @transform_0(%arg0: i32, %arg1: i32) -> (i32, i32) {
    %c0_i32 = arith.constant 0 : i32
    %c0_i32_0 = arith.constant 0 : i32
    return %arg0, %c0_i32 : i32, i32
  }
  func.func @transform_1(%arg0: i32, %arg1: i32) -> (i32, i32) {
    %c0_i32 = arith.constant 0 : i32
    %c0_i32_0 = arith.constant 0 : i32
    return %arg0, %c0_i32 : i32, i32
  }
  func.func @transform_2(%arg0: i32, %arg1: i32) -> (i32, i32) {
    %c0_i32 = arith.constant 0 : i32
    return %arg0, %arg1 : i32, i32
  }
  func.func @transform_3(%arg0: i32, %arg1: i32) -> (i32, i32) {
    %c0_i32 = arith.constant 0 : i32
    return %arg0, %arg1 : i32, i32
  }
}

</mosaic_0001>

<llo_original>
// kernel: tpu_custom_call.1
$region0: #{tpu_custom_call.1}
  #allocation0 [shape = 'u32[]', space=smem, size = 0x4, offset = 0x4, fixed_abs, tag = 'smem constant byte address 0x4 - core index']
  #allocation1 [shape = 'u32[72,128]{1,0:T(1,128)}', space=vmem, size = 0x9000, scoped, tag = 'internal scratch']
  %s0 = inlined_call_operand.vmem [shape: f32[16,1], index: 0, kind: input, shape index: {}]
  %s1 = inlined_call_operand.vmem [shape: f32[16,1], index: 1, kind: input, shape index: {}]
  %s2 = inlined_call_operand.vmem [shape: f32[16,256], index: 2, kind: input, shape index: {}]
  %s3 = inlined_call_operand.hbm [shape: f32[16,256], index: 3, kind: output, shape index: {}]
  %s4 = sld [smem:[#allocation0]]
  $region83: #{tpu_custom_call.1} parent=0
    _
  %s6 = ssub.s32 1, %s4
  %s7 = scalar_select 0, %s6, %s4
  $region1: #{tpu_custom_call.1} parent=0
    #allocation2 [shape = 'u8[16384]{0}', space=vmem, size = 0x4000, scoped, tag = 'input window, operand 2']
    #allocation3 [shape = 'u8[16384]{0}', space=vmem, size = 0x4000, scoped, tag = 'output window, operand 0']
    #allocation4 [shape = 's32[2]{0}', space=sflag, size = 0x8, scoped, tag = 'scoped memory for tpu_custom_call.1']
    %8 = vsyncpa [#allocation4], 0
    %s9 = scalar_lea.sflag [#allocation4], 1
    %10 = vsyncpa %s9, 0
    loop: start=0, step=1, limit=4
    $region2: #{tpu_custom_call.1} parent=1 // loop_pre_header
      _
    $region3: #{tpu_custom_call.1} parent=1 // loop_header
      %s12 = sphi 0, %s16
      %p13 = scmp.ge.s32.totalorder %s12, 4
      %s19 = sphi 0, %s31
      %s20 = sphi 0, %s27
      %s21 = sphi 0, %s19
      %s22 = sphi 0, %s20
      %s23 = sphi 0, %s21
      %s24 = sphi 0, %s22
      %s34 = sphi 0, %s36
      %s37 = sphi 0, %s34
      %s38 = sphi 0, %s37
      %s54 = sphi 0, %s38
      %s60 = sphi 0, %s62
      %s63 = sphi 0, %s60
      %s64 = sphi 0, %s63
      %s80 = sphi 0, %s64
      %s88 = sphi 0, %s90
      %s91 = sphi 0, %s88
      %s92 = sphi 0, %s91
      %s108 = sphi 0, %s92
      %s116 = sphi 0, %s118
      %s119 = sphi 0, %s116
      %s120 = sphi 0, %s119
      %s136 = sphi 0, %s120
    $region4: #{tpu_custom_call.1} parent=1 // loop_header_branch
      %15 = sbr.rel (%p13) target = $region8
    $region5: #{tpu_custom_call.1} parent=1 // loop_body
      %s17 = ssub.s32 %s12, 1
      %s18 = ssub.s32 %s12, 2
      %s25 = sadd.s32 1, %s20
      %p26 = scmp.ge.s32.totalorder %s25, 2
      %s27 = scalar_select %p26, 0, %s25
      %s28 = sadd.s32 1, %s19
      %s29 = scalar_select %p26, %s28, %s19
      %p30 = scmp.ge.s32.totalorder %s29, 1
      %s31 = scalar_select %p30, 0, %s29
      %s32 = ssub.s32 %s19, %s31
      %p33 = scmp.eq.s32.totalorder %s32, 0
      %s35 = sadd.s32 %s34, 1
      %s36 = scalar_select %p33, %s34, %s35
      %p39 = pneg %p33
      %p40 = scmp.eq.s32.totalorder %s12, 1
      %p41 = por %p39, %p40
      %p42 = scmp.ne.s32.totalorder %s34, %s37
      %p43 = scmp.eq.s32.totalorder %s12, 0
      %p44 = por %p42, %p43
      %p45 = scmp.ne.s32.totalorder %s34, %s37
      %p46 = scmp.eq.s32.totalorder %s17, 1
      %p47 = por %p45, %p46
      %p48 = scmp.ne.s32.totalorder %s37, %s38
      %p49 = scmp.eq.s32.totalorder %s17, 0
      %p50 = por %p48, %p49
      %p51 = scmp.ne.s32.totalorder %s37, %s38
      %p52 = scmp.eq.s32.totalorder %s18, 1
      %p53 = por %p51, %p52
      %p55 = scmp.ne.s32.totalorder %s38, %s54
      %p56 = scmp.eq.s32.totalorder %s18, 0
      %p57 = por %p55, %p56
      %s58 = ssub.s32 %s19, %s31
      %p59 = scmp.eq.s32.totalorder %s58, 0
      %s61 = sadd.s32 %s60, 1
      %s62 = scalar_select %p59, %s60, %s61
      %p65 = pneg %p59
      %p66 = scmp.eq.s32.totalorder %s12, 1
      %p67 = por %p65, %p66
      %p68 = scmp.ne.s32.totalorder %s60, %s63
      %p69 = scmp.eq.s32.totalorder %s12, 0
      %p70 = por %p68, %p69
      %p71 = scmp.ne.s32.totalorder %s60, %s63
      %p72 = scmp.eq.s32.totalorder %s17, 1
      %p73 = por %p71, %p72
      %p74 = scmp.ne.s32.totalorder %s63, %s64
      %p75 = scmp.eq.s32.totalorder %s17, 0
      %p76 = por %p74, %p75
      %p77 = scmp.ne.s32.totalorder %s63, %s64
      %p78 = scmp.eq.s32.totalorder %s18, 1
      %p79 = por %p77, %p78
      %p81 = scmp.ne.s32.totalorder %s64, %s80
      %p82 = scmp.eq.s32.totalorder %s18, 0
      %p83 = por %p81, %p82
      %s84 = ssub.s32 %s19, %s31
      %s85 = ssub.s32 %s20, %s27
      %s86 = sor.u32 %s84, %s85
      %p87 = scmp.eq.s32.totalorder %s86, 0
      %s89 = sadd.s32 %s88, 1
      %s90 = scalar_select %p87, %s88, %s89
      %p93 = pneg %p87
      %p94 = scmp.eq.s32.totalorder %s12, 1
      %p95 = por %p93, %p94
      %p96 = scmp.ne.s32.totalorder %s88, %s91
      %p97 = scmp.eq.s32.totalorder %s12, 0
      %p98 = por %p96, %p97
      %p99 = scmp.ne.s32.totalorder %s88, %s91
      %p100 = scmp.eq.s32.totalorder %s17, 1
      %p101 = por %p99, %p100
      %p102 = scmp.ne.s32.totalorder %s91, %s92
      %p103 = scmp.eq.s32.totalorder %s17, 0
      %p104 = por %p102, %p103
      %p105 = scmp.ne.s32.totalorder %s91, %s92
      %p106 = scmp.eq.s32.totalorder %s18, 1
      %p107 = por %p105, %p106
      %p109 = scmp.ne.s32.totalorder %s92, %s108
      %p110 = scmp.eq.s32.totalorder %s18, 0
      %p111 = por %p109, %p110
      %s112 = ssub.s32 %s19, %s31
      %s113 = ssub.s32 %s20, %s27
      %s114 = sor.u32 %s112, %s113
      %p115 = scmp.eq.s32.totalorder %s114, 0
      %s117 = sadd.s32 %s116, 1
      %s118 = scalar_select %p115, %s116, %s117
      %p121 = pneg %p115
      %p122 = scmp.eq.s32.totalorder %s12, 1
      %p123 = por %p121, %p122
      %p124 = scmp.ne.s32.totalorder %s116, %s119
      %p125 = scmp.eq.s32.totalorder %s12, 0
      %p126 = por %p124, %p125
      %p127 = scmp.ne.s32.totalorder %s116, %s119
      %p128 = scmp.eq.s32.totalorder %s17, 1
      %p129 = por %p127, %p128
      %p130 = scmp.ne.s32.totalorder %s119, %s120
      %p131 = scmp.eq.s32.totalorder %s17, 0
      %p132 = por %p130, %p131
      %p133 = scmp.ne.s32.totalorder %s119, %s120
      %p134 = scmp.eq.s32.totalorder %s18, 1
      %p135 = por %p133, %p134
      %p137 = scmp.ne.s32.totalorder %s120, %s136
      %p138 = scmp.eq.s32.totalorder %s18, 0
      %p139 = por %p137, %p138
      %p140 = scmp.le.s32.totalorder 1, %s12
      %p141 = scmp.lt.s32.totalorder %s12, 3
      %p142 = pnand %p140, %p141
      %p143 = pneg %p142
      // Predicated region
      $region9: #{tpu_custom_call.1} parent=5 // pred_check
        _
      $region10: #{tpu_custom_call.1} parent=5 // pred_check_branch
        %145 = sbr.rel (%p142) target = $region12
      $region11: #{tpu_custom_call.1} parent=5 // pred_region
        %s146 = ssub.s32 %s12, 1
        // Predicated region
        $region13: #{tpu_custom_call.1} parent=11 // pred_check
          %p147 = pneg %p50
        $region14: #{tpu_custom_call.1} parent=11 // pred_check_branch
          %149 = sbr.rel (%p147) target = $region16
        $region15: #{tpu_custom_call.1} parent=11 // pred_region
          %s150 = smul.u32 2, %s21
          %p151 = scmp.lt.s32.totalorder %s150, 1
          %s152 = scalar_select %p151, %s150, 1
          %s153 = smul.addr %s152, 8
          %s154 = scalar_lea.vmem %s0, %s153
          %s155 = smul.u32 2, %s21
        $region16: #{tpu_custom_call.1} parent=11 // pred_fallthru
          _
        // Predicated region
        $region17: #{tpu_custom_call.1} parent=11 // pred_check
          %p156 = pneg %p76
        $region18: #{tpu_custom_call.1} parent=11 // pred_check_branch
          %158 = sbr.rel (%p156) target = $region20
        $region19: #{tpu_custom_call.1} parent=11 // pred_region
          %s159 = smul.u32 2, %s21
          %p160 = scmp.lt.s32.totalorder %s159, 1
          %s161 = scalar_select %p160, %s159, 1
          %s162 = smul.addr %s161, 8
          %s163 = scalar_lea.vmem %s1, %s162
          %s164 = smul.u32 2, %s21
        $region20: #{tpu_custom_call.1} parent=11 // pred_fallthru
          _
      $region12: #{tpu_custom_call.1} parent=5 // pred_fallthru
        _
      %p165 = scmp.lt.s32.totalorder %s12, 2
      // Predicated region
      $region21: #{tpu_custom_call.1} parent=5 // pred_check
        %p166 = pneg %p165
      $region22: #{tpu_custom_call.1} parent=5 // pred_check_branch
        %168 = sbr.rel (%p166) target = $region24
      $region23: #{tpu_custom_call.1} parent=5 // pred_region
        // Predicated region
        $region25: #{tpu_custom_call.1} parent=23 // pred_check
          %p169 = pneg %p98
        $region26: #{tpu_custom_call.1} parent=23 // pred_check_branch
          %171 = sbr.rel (%p169) target = $region28
        $region27: #{tpu_custom_call.1} parent=23 // pred_region
          %s172 = sand.u32 %s88, 1
          %s173 = sand.u32 %s88, 1
          %s174 = smul.addr %s173, 16
          %s175 = scalar_lea.vmem [#allocation2], %s174
          %s176 = smul.u32 2, %s19
          %s177 = smul.addr %s176, 2
          %s178 = sadd.s32 %s20, %s177
          %s179 = smul.addr %s178, 8
          %s180 = scalar_lea.vmem %s2, %s179
          // Predicated region
          $region29: #{tpu_custom_call.1} parent=27 // pred_check
            _
          $region30: #{tpu_custom_call.1} parent=27 // pred_check_branch
            %182 = sbr.rel (0) target = $region32
          $region31: #{tpu_custom_call.1} parent=27 // pred_region
            // Predicated region
            $region33: #{tpu_custom_call.1} parent=31 // pred_check
              _
            $region34: #{tpu_custom_call.1} parent=31 // pred_check_branch
              %184 = sbr.rel (0) target = $region36
            $region35: #{tpu_custom_call.1} parent=31 // pred_region
              // Predicated region
              $region48: #{tpu_custom_call.1} parent=35 // pred_check
                _
              $region49: #{tpu_custom_call.1} parent=35 // pred_check_branch
                %202 = sbr.rel (0) target = $region51
              $region50: #{tpu_custom_call.1} parent=35 // pred_region
                loop: start=0, step=1, limit=1
                $region52: #{tpu_custom_call.1} parent=50 // loop_pre_header
                  _
                $region53: #{tpu_custom_call.1} parent=50 // loop_header
                  %s204 = sphi 0, %s208
                  %p205 = scmp.ge.s32.totalorder %s204, 1
                  %s209 = sphi %s180, %s180
                  %s210 = sphi %s175, %s175
                $region54: #{tpu_custom_call.1} parent=50 // loop_header_branch
                  %207 = sbr.rel (%p205) target = $region58
                $region55: #{tpu_custom_call.1} parent=50 // loop_body
                  %v211 = vld [vmem:[%s209] sm:$0xff]
                  %212 = vst [vmem:[%s210] sm:$0xff] %v211
                  %v213 = vld [vmem:[%s209 + $0x10] sm:$0xff]
                  %214 = vst [vmem:[%s210 + $0x8] sm:$0xff] %v213
                $region56: #{tpu_custom_call.1} parent=50 // loop_footer
                  %s208 = sadd.s32 1, %s204
                $region57: #{tpu_custom_call.1} parent=50 // loop_footer_branch
                  %203 = sbr.rel target = $region53
                $region58: #{tpu_custom_call.1} parent=50 // loop_exit
                  _
              $region51: #{tpu_custom_call.1} parent=35 // pred_fallthru
                _
              // Predicated region
              $region59: #{tpu_custom_call.1} parent=35 // pred_check
                _
              $region60: #{tpu_custom_call.1} parent=35 // pred_check_branch
                %216 = sbr.rel target = $region62
              $region61: #{tpu_custom_call.1} parent=35 // pred_region
                _
              $region62: #{tpu_custom_call.1} parent=35 // pred_fallthru
                _
            $region36: #{tpu_custom_call.1} parent=31 // pred_fallthru
              _
            // Predicated region
            $region37: #{tpu_custom_call.1} parent=31 // pred_check
              _
            $region38: #{tpu_custom_call.1} parent=31 // pred_check_branch
              %186 = sbr.rel target = $region40
            $region39: #{tpu_custom_call.1} parent=31 // pred_region
              %s188 = ssub.s32 256, 1
              loop: start=0, step=1, limit=1
              $region41: #{tpu_custom_call.1} parent=39 // loop_pre_header
                _
              $region42: #{tpu_custom_call.1} parent=39 // loop_header
                %s190 = sphi 0, %s194
                %p191 = scmp.ge.s32.totalorder %s190, 1
                %s195 = sphi %s180, %s180
                %s196 = sphi %s175, %s175
              $region43: #{tpu_custom_call.1} parent=39 // loop_header_branch
                %193 = sbr.rel (%p191) target = $region47
              $region44: #{tpu_custom_call.1} parent=39 // loop_body
                %v197 = vld [vmem:[%s195] sm:%s188]
                %198 = vst [vmem:[%s196] sm:%s188] %v197
                %v199 = vld [vmem:[%s195 + $0x10] sm:%s188]
                %200 = vst [vmem:[%s196 + $0x8] sm:%s188] %v199
              $region45: #{tpu_custom_call.1} parent=39 // loop_footer
                %s194 = sadd.s32 1, %s190
              $region46: #{tpu_custom_call.1} parent=39 // loop_footer_branch
                %189 = sbr.rel target = $region42
              $region47: #{tpu_custom_call.1} parent=39 // loop_exit
                _
            $region40: #{tpu_custom_call.1} parent=31 // pred_fallthru
              _
          $region32: #{tpu_custom_call.1} parent=27 // pred_fallthru
            _
          %217 = vnop
        $region28: #{tpu_custom_call.1} parent=23 // pred_fallthru
          _
      $region24: #{tpu_custom_call.1} parent=5 // pred_fallthru
        _
      %p218 = scmp.le.s32.totalorder 1, %s12
      %p219 = scmp.lt.s32.totalorder %s12, 3
      %p220 = pnand %p218, %p219
      %p221 = pneg %p220
      // Predicated region
      $region63: #{tpu_custom_call.1} parent=5 // pred_check
        _
      $region64: #{tpu_custom_call.1} parent=5 // pred_check_branch
        %223 = sbr.rel (%p220) target = $region66
      $region65: #{tpu_custom_call.1} parent=5 // pred_region
        %s224 = ssub.s32 %s12, 1
        %s225 = sand.u32 %s91, 1
        %s226 = sand.u32 %s91, 1
        %s227 = smul.addr %s226, 16
        %s228 = scalar_lea.vmem [#allocation2], %s227
        // Predicated region
        $region67: #{tpu_custom_call.1} parent=65 // pred_check
          %p229 = pneg %p104
        $region68: #{tpu_custom_call.1} parent=65 // pred_check_branch
          %231 = sbr.rel (%p229) target = $region70
        $region69: #{tpu_custom_call.1} parent=65 // pred_region
          _
        $region70: #{tpu_custom_call.1} parent=65 // pred_fallthru
          _
        %s232 = smul.u32 2, %s21
        %p233 = scmp.lt.s32.totalorder %s232, 1
        %s234 = scalar_select %p233, %s232, 1
        %s235 = smul.addr %s234, 8
        %s236 = scalar_lea.vmem %s0, %s235
        %p237 = pneg %p50
        %p238 = pneg %p47
        %s239 = smul.u32 2, %s21
        %p240 = scmp.lt.s32.totalorder %s239, 1
        %s241 = scalar_select %p240, %s239, 1
        %s242 = smul.addr %s241, 8
        %s243 = scalar_lea.vmem %s1, %s242
        %p244 = pneg %p76
        %p245 = pneg %p73
        %s246 = sand.u32 %s91, 1
        %s247 = sand.u32 %s91, 1
        %s248 = smul.addr %s247, 16
        %s249 = scalar_lea.vmem [#allocation2], %s248
        %p250 = pneg %p104
        %p251 = pneg %p101
        %p252 = pneg %p132
        %p253 = pneg %p129
        %s254 = sand.u32 %s119, 1
        %s255 = scalar_lea.sflag [#allocation4], %s254
        %s256 = sand.u32 %s119, 1
        %s257 = smul.addr %s256, 16
        %s258 = scalar_lea.vmem [#allocation3], %s257
        %s259 = smul.u32 2, %s21
        %p260 = scmp.lt.s32.totalorder %s259, 1
        %s261 = scalar_select %p260, %s259, 1
        %s262 = smul.addr %s261, 8
        %s263 = scalar_lea.vmem %s0, %s262
        %s264 = smul.u32 2, %s21
        %s265 = smul.u32 2, %s21
        %p266 = scmp.lt.s32.totalorder %s265, 1
        %s267 = scalar_select %p266, %s265, 1
        %s268 = smul.addr %s267, 8
        %s269 = scalar_lea.vmem %s1, %s268
        %s270 = smul.u32 2, %s21
        %s271 = smul.u32 2, %s21
        %s272 = smul.u32 2, %s21
        %v273 = vld [vmem:[%s263] sm:$0xff]
        %v274 = vld [vmem:[%s263 + $0x8] sm:$0xff]
        %v275 = vld [vmem:[%s228] sm:$0xff]
        %v276 = vld [vmem:[%s228 + $0x8] sm:$0xff]
        %278 = vset.pattern.permute.xlu0 0
        %279 = vperm.xlu0 %278, %v273
        %v280 = vpop.permute.xlu0 %279
        %283 = vset.pattern.permute.xlu0 0
        %284 = vperm.xlu0 %283, %v274
        %v285 = vpop.permute.xlu0 %284
        %v287 = vmul.f32 %v280, %v275
        %v288 = vmul.f32 %v285, %v276
        %v289 = vld [vmem:[%s269] sm:$0xff]
        %v290 = vld [vmem:[%s269 + $0x8] sm:$0xff]
        %292 = vset.pattern.permute.xlu0 0
        %293 = vperm.xlu0 %292, %v289
        %v294 = vpop.permute.xlu0 %293
        %297 = vset.pattern.permute.xlu0 0
        %298 = vperm.xlu0 %297, %v290
        %v299 = vpop.permute.xlu0 %298
        %v301 = vadd.f32 %v287, %v294
        %v302 = vadd.f32 %v288, %v299
        %303 = vst [vmem:[%s258] sm:$0xff] %v301
        %304 = vst [vmem:[%s258 + $0x8] sm:$0xff] %v302
        %s305 = sand.u32 %s119, 1
        %s306 = scalar_lea.sflag [#allocation4], %s305
        %s307 = sand.u32 %s119, 1
        %s308 = smul.addr %s307, 16
        %s309 = scalar_lea.vmem [#allocation3], %s308
        // Predicated region
        $region71: #{tpu_custom_call.1} parent=65 // pred_check
          %p310 = pneg %p129
        $region72: #{tpu_custom_call.1} parent=65 // pred_check_branch
          %312 = sbr.rel (%p310) target = $region74
        $region73: #{tpu_custom_call.1} parent=65 // pred_region
          %s313 = smul.u32 2, %s21
          %315 = vsyncadd %s306, 0
          %s316 = smul.addr %s313, 2
          %s317 = sadd.s32 %s22, %s316
          %s318 = smul.addr %s317, 8
          %s319 = scalar_lea.hbm %s3, %s318
          %s320 = sshll.u32 %s309, 4
          %s321 = int_to_ptr.vmem [resolvable:$true] %s320
          %s322 = sshll.u32 %s319, 4
          %s323 = int_to_ptr.hbm [resolvable:$true] %s322
          %328 = dma.vmem_to_hbm [thread:$0]  %s321, 256, %s323, %s306, 128, 256, 8
        $region74: #{tpu_custom_call.1} parent=65 // pred_fallthru
          _
      $region66: #{tpu_custom_call.1} parent=5 // pred_fallthru
        _
      %p329 = scmp.le.s32.totalorder 2, %s12
      // Predicated region
      $region75: #{tpu_custom_call.1} parent=5 // pred_check
        %p330 = pneg %p329
      $region76: #{tpu_custom_call.1} parent=5 // pred_check_branch
        %332 = sbr.rel (%p330) target = $region78
      $region77: #{tpu_custom_call.1} parent=5 // pred_region
        %s333 = ssub.s32 %s12, 2
        // Predicated region
        $region79: #{tpu_custom_call.1} parent=77 // pred_check
          %p334 = pneg %p135
        $region80: #{tpu_custom_call.1} parent=77 // pred_check_branch
          %336 = sbr.rel (%p334) target = $region82
        $region81: #{tpu_custom_call.1} parent=77 // pred_region
          %s337 = sand.u32 %s120, 1
          %s338 = scalar_lea.sflag [#allocation4], %s337
          %s339 = sand.u32 %s120, 1
          %s340 = smul.addr %s339, 16
          %s341 = scalar_lea.vmem [#allocation3], %s340
          %343 = dma.done %s338, 256
        $region82: #{tpu_custom_call.1} parent=77 // pred_fallthru
          _
      $region78: #{tpu_custom_call.1} parent=5 // pred_fallthru
        _
    $region6: #{tpu_custom_call.1} parent=1 // loop_footer
      %s16 = sadd.s32 1, %s12
    $region7: #{tpu_custom_call.1} parent=1 // loop_footer_branch
      %11 = sbr.rel target = $region3
    $region8: #{tpu_custom_call.1} parent=1 // loop_exit
      _
    %344 = vsyncpa [#allocation4], 1
    %s345 = scalar_lea.sflag [#allocation4], 1
    %346 = vsyncpa %s345, 1

</llo_original>
